<compile_context>
chip_gen: v7x
topology: tpu7x:2x2x1
jax: 0.10.0
libtpu: 0.0.40
codegen_flags: <defaults>
</compile_context>

<pallas_src>
import jax
import jax.numpy as jnp
from jax.experimental import pallas as pl
from jax.experimental.pallas import tpu as pltpu

EPS = 1e-5


def _complex_bn_kernel(xr_ref, xi_ref, wr_ref, br_ref, wi_ref, bi_ref,
                       or_ref, oi_ref):
    """xr/xi blocks: (N, TC, HW) f32; wr/br/wi/bi blocks: (TC, 1) f32."""
    n, _, hw = xr_ref.shape
    inv_count = 1.0 / float(n * hw)

    def bn(x, w, b, o_ref):
        # Per-channel batch statistics over (N, H*W); two-pass form
        # (subtract-then-square) for numerical safety.
        mean = jnp.sum(x, axis=(0, 2), keepdims=True) * inv_count     # (1,TC,1)
        xc = x - mean
        var = jnp.sum(xc * xc, axis=(0, 2), keepdims=True) * inv_count
        # Fused affine: out = (x - mean) * (rsqrt(var+eps) * w) + b
        scale = jax.lax.rsqrt(var + EPS) * w[None]                    # (1,TC,1)
        o_ref[...] = (xc * scale + b[None]).astype(o_ref.dtype)

    bn(xr_ref[...], wr_ref[...], br_ref[...], or_ref)
    bn(xi_ref[...], wi_ref[...], bi_ref[...], oi_ref)


def _pick_channel_tile(C, N, HW, budget_bytes=16 << 20):
    """Largest channel tile whose double-buffered blocks fit the VMEM budget."""
    # 2 input + 2 output f32 blocks of (N, TC, HW), each double-buffered.
    per_channel = 8 * N * HW * 4
    max_tc = max(1, budget_bytes // per_channel)
    if C <= max_tc:
        return C                      # whole channel axis in one block
    tc = (max_tc // 8) * 8            # keep (8,128) block constraint / sublane packing
    if tc == 0:
        # TODO(synk): very large N*H*W — a two-pass L-tiled reduction grid
        # (accumulate sum/sumsq with pl.when init/finalize) would be needed.
        tc = 8
    return min(tc, C)


def complex_batchnorm2d(x, w_r, b_r, w_i, b_i):
    """x: complex64 NCHW. Returns complex64 NCHW."""
    N, C, H, W = x.shape
    HW = H * W

    # Free reshapes only — no transposes, no extra HBM passes.
    xr = jnp.real(x).astype(jnp.float32).reshape(N, C, HW)
    xi = jnp.imag(x).astype(jnp.float32).reshape(N, C, HW)

    wr = w_r.reshape(C, 1).astype(jnp.float32)
    br = b_r.reshape(C, 1).astype(jnp.float32)
    wi = w_i.reshape(C, 1).astype(jnp.float32)
    bi = b_i.reshape(C, 1).astype(jnp.float32)

    TC = _pick_channel_tile(C, N, HW)
    grid = (pl.cdiv(C, TC),)

    # Note: if C % TC != 0 the last block is partial; per-channel stats are
    # independent, so any padded channels only produce discarded outputs.
    x_spec = pl.BlockSpec((N, TC, HW), lambda i: (0, i, 0))
    p_spec = pl.BlockSpec((TC, 1), lambda i: (i, 0))

    cost = pl.CostEstimate(
        flops=12 * N * C * HW,                       # ~6 VALU ops/elem x 2 parts
        transcendentals=2 * C,                       # one rsqrt per channel/part
        bytes_accessed=4 * N * C * HW * 4 + 4 * C * 4,
    )

    out_r, out_i = pl.pallas_call(
        _complex_bn_kernel,
        grid=grid,
        in_specs=[x_spec, x_spec, p_spec, p_spec, p_spec, p_spec],
        out_specs=[x_spec, x_spec],
        out_shape=(jax.ShapeDtypeStruct((N, C, HW), jnp.float32),
                   jax.ShapeDtypeStruct((N, C, HW), jnp.float32)),
        compiler_params=pltpu.CompilerParams(
            dimension_semantics=("parallel",),       # independent channel tiles
            vmem_limit_bytes=32 << 20,               # above v5e's 16 MiB default
        ),
        cost_estimate=cost,
    )(xr, xi, wr, br, wi, bi)

    out_r = out_r.reshape(N, C, H, W)
    out_i = out_i.reshape(N, C, H, W)
    return jax.lax.complex(out_r, out_i)


def _reference(x, w_r, b_r, w_i, b_i):
    """Pure-JAX reference matching PyTorch BatchNorm2d (training mode)."""
    def bn(p, w, b):
        mean = jnp.mean(p, axis=(0, 2, 3), keepdims=True)
        var = jnp.mean((p - mean) ** 2, axis=(0, 2, 3), keepdims=True)
        return (p - mean) / jnp.sqrt(var + EPS) * w.reshape(1, -1, 1, 1) \
               + b.reshape(1, -1, 1, 1)
    return jax.lax.complex(bn(jnp.real(x), w_r, b_r),
                           bn(jnp.imag(x), w_i, b_i))


if __name__ == "__main__":
    key = jax.random.PRNGKey(0)
    k1, k2 = jax.random.split(key)

    N, C, H, W = 2, 4, 16, 16
    xr = jax.random.normal(k1, (N, C, H, W), dtype=jnp.float32)
    xi = jax.random.normal(k2, (N, C, H, W), dtype=jnp.float32)
    x = jax.lax.complex(xr, xi)  # complex64, NCHW

    # Deterministic PyTorch-default affine params: weight = 1, bias = 0.
    w_r = jnp.ones((C,), jnp.float32)
    b_r = jnp.zeros((C,), jnp.float32)
    w_i = jnp.ones((C,), jnp.float32)
    b_i = jnp.zeros((C,), jnp.float32)

    out = complex_batchnorm2d(x, w_r, b_r, w_i, b_i)
    out = jax.block_until_ready(out)

    ref = _reference(x, w_r, b_r, w_i, b_i)
    assert out.shape == (N, C, H, W) and out.dtype == jnp.complex64
    assert jnp.allclose(jnp.real(out), jnp.real(ref), atol=1e-5, rtol=1e-5)
    assert jnp.allclose(jnp.imag(out), jnp.imag(ref), atol=1e-5, rtol=1e-5)

    print("KERNEL_OK")
</pallas_src>

<mosaic_0001>
module attributes {stable_mosaic.version = 11 : i64} {
  func.func @_complex_bn_kernel(%arg0: i32, %arg1: memref<2x4x256xf32, #tpu.memory_space<vmem>>, %arg2: memref<2x4x256xf32, #tpu.memory_space<vmem>>, %arg3: memref<4x1xf32, #tpu.memory_space<vmem>>, %arg4: memref<4x1xf32, #tpu.memory_space<vmem>>, %arg5: memref<4x1xf32, #tpu.memory_space<vmem>>, %arg6: memref<4x1xf32, #tpu.memory_space<vmem>>, %arg7: memref<2x4x256xf32, #tpu.memory_space<vmem>>, %arg8: memref<2x4x256xf32, #tpu.memory_space<vmem>>) attributes {dimension_semantics = [#tpu.dimension_semantics<parallel>], iteration_bounds = array<i64: 1>, scalar_prefetch = 0 : i64, scratch_operands = 0 : i64, tpu.core_type = #tpu.core_type<tc>, window_params = [{transform_indices = @transform_0, window_bounds = array<i64: 2, 4, 256>}, {transform_indices = @transform_1, window_bounds = array<i64: 2, 4, 256>}, {transform_indices = @transform_2, window_bounds = array<i64: 4, 1>}, {transform_indices = @transform_3, window_bounds = array<i64: 4, 1>}, {transform_indices = @transform_4, window_bounds = array<i64: 4, 1>}, {transform_indices = @transform_5, window_bounds = array<i64: 4, 1>}, {transform_indices = @transform_6, window_bounds = array<i64: 2, 4, 256>}, {transform_indices = @transform_7, window_bounds = array<i64: 2, 4, 256>}]} {
    %c0 = arith.constant 0 : index
    %c0_0 = arith.constant 0 : index
    %c0_1 = arith.constant 0 : index
    %0 = vector.load %arg1[%c0, %c0_0, %c0_1] : memref<2x4x256xf32, #tpu.memory_space<vmem>>, vector<2x4x256xf32>
    %c0_2 = arith.constant 0 : index
    %c0_3 = arith.constant 0 : index
    %1 = vector.load %arg3[%c0_2, %c0_3] : memref<4x1xf32, #tpu.memory_space<vmem>>, vector<4x1xf32>
    %c0_4 = arith.constant 0 : index
    %c0_5 = arith.constant 0 : index
    %2 = vector.load %arg4[%c0_4, %c0_5] : memref<4x1xf32, #tpu.memory_space<vmem>>, vector<4x1xf32>
    %cst = arith.constant dense<0.000000e+00> : vector<4xf32>
    %3 = vector.multi_reduction <add>, %0, %cst [0, 2] : vector<2x4x256xf32> to vector<4xf32>
    %4 = vector.shape_cast %3 : vector<4xf32> to vector<1x4x1xf32>
    %cst_6 = arith.constant 0.001953125 : f32
    %5 = vector.broadcast %cst_6 : f32 to vector<1x4x1xf32>
    %6 = arith.mulf %4, %5 : vector<1x4x1xf32>
    %7 = vector.broadcast %6 : vector<1x4x1xf32> to vector<2x4x256xf32>
    %8 = arith.subf %0, %7 : vector<2x4x256xf32>
    %9 = arith.mulf %8, %8 : vector<2x4x256xf32>
    %cst_7 = arith.constant dense<0.000000e+00> : vector<4xf32>
    %10 = vector.multi_reduction <add>, %9, %cst_7 [0, 2] : vector<2x4x256xf32> to vector<4xf32>
    %11 = vector.shape_cast %10 : vector<4xf32> to vector<1x4x1xf32>
    %cst_8 = arith.constant 0.001953125 : f32
    %12 = vector.broadcast %cst_8 : f32 to vector<1x4x1xf32>
    %13 = arith.mulf %11, %12 : vector<1x4x1xf32>
    %cst_9 = arith.constant 9.99999974E-6 : f32
    %14 = vector.broadcast %cst_9 : f32 to vector<1x4x1xf32>
    %15 = arith.addf %13, %14 : vector<1x4x1xf32>
    %16 = math.rsqrt %15 : vector<1x4x1xf32>
    %17 = vector.shape_cast %1 : vector<4x1xf32> to vector<1x4x1xf32>
    %18 = arith.mulf %16, %17 : vector<1x4x1xf32>
    %19 = vector.broadcast %18 : vector<1x4x1xf32> to vector<2x4x256xf32>
    %20 = arith.mulf %8, %19 : vector<2x4x256xf32>
    %21 = vector.shape_cast %2 : vector<4x1xf32> to vector<1x4x1xf32>
    %22 = vector.broadcast %21 : vector<1x4x1xf32> to vector<2x4x256xf32>
    %23 = arith.addf %20, %22 : vector<2x4x256xf32>
    %c0_10 = arith.constant 0 : index
    %c0_11 = arith.constant 0 : index
    %c0_12 = arith.constant 0 : index
    %24 = vector.load %arg7[%c0_10, %c0_11, %c0_12] : memref<2x4x256xf32, #tpu.memory_space<vmem>>, vector<2x4x256xf32>
    tpu.vector_store %arg7[%c0_10, %c0_11, %c0_12], %23 {strides = array<i32>} : memref<2x4x256xf32, #tpu.memory_space<vmem>>, vector<2x4x256xf32>,
    %c0_13 = arith.constant 0 : index
    %c0_14 = arith.constant 0 : index
    %c0_15 = arith.constant 0 : index
    %25 = vector.load %arg2[%c0_13, %c0_14, %c0_15] : memref<2x4x256xf32, #tpu.memory_space<vmem>>, vector<2x4x256xf32>
    %c0_16 = arith.constant 0 : index
    %c0_17 = arith.constant 0 : index
    %26 = vector.load %arg5[%c0_16, %c0_17] : memref<4x1xf32, #tpu.memory_space<vmem>>, vector<4x1xf32>
    %c0_18 = arith.constant 0 : index
    %c0_19 = arith.constant 0 : index
    %27 = vector.load %arg6[%c0_18, %c0_19] : memref<4x1xf32, #tpu.memory_space<vmem>>, vector<4x1xf32>
    %cst_20 = arith.constant dense<0.000000e+00> : vector<4xf32>
    %28 = vector.multi_reduction <add>, %25, %cst_20 [0, 2] : vector<2x4x256xf32> to vector<4xf32>
    %29 = vector.shape_cast %28 : vector<4xf32> to vector<1x4x1xf32>
    %cst_21 = arith.constant 0.001953125 : f32
    %30 = vector.broadcast %cst_21 : f32 to vector<1x4x1xf32>
    %31 = arith.mulf %29, %30 : vector<1x4x1xf32>
    %32 = vector.broadcast %31 : vector<1x4x1xf32> to vector<2x4x256xf32>
    %33 = arith.subf %25, %32 : vector<2x4x256xf32>
    %34 = arith.mulf %33, %33 : vector<2x4x256xf32>
    %cst_22 = arith.constant dense<0.000000e+00> : vector<4xf32>
    %35 = vector.multi_reduction <add>, %34, %cst_22 [0, 2] : vector<2x4x256xf32> to vector<4xf32>
    %36 = vector.shape_cast %35 : vector<4xf32> to vector<1x4x1xf32>
    %cst_23 = arith.constant 0.001953125 : f32
    %37 = vector.broadcast %cst_23 : f32 to vector<1x4x1xf32>
    %38 = arith.mulf %36, %37 : vector<1x4x1xf32>
    %cst_24 = arith.constant 9.99999974E-6 : f32
    %39 = vector.broadcast %cst_24 : f32 to vector<1x4x1xf32>
    %40 = arith.addf %38, %39 : vector<1x4x1xf32>
    %41 = math.rsqrt %40 : vector<1x4x1xf32>
    %42 = vector.shape_cast %26 : vector<4x1xf32> to vector<1x4x1xf32>
    %43 = arith.mulf %41, %42 : vector<1x4x1xf32>
    %44 = vector.broadcast %43 : vector<1x4x1xf32> to vector<2x4x256xf32>
    %45 = arith.mulf %33, %44 : vector<2x4x256xf32>
    %46 = vector.shape_cast %27 : vector<4x1xf32> to vector<1x4x1xf32>
    %47 = vector.broadcast %46 : vector<1x4x1xf32> to vector<2x4x256xf32>
    %48 = arith.addf %45, %47 : vector<2x4x256xf32>
    %c0_25 = arith.constant 0 : index
    %c0_26 = arith.constant 0 : index
    %c0_27 = arith.constant 0 : index
    %49 = vector.load %arg8[%c0_25, %c0_26, %c0_27] : memref<2x4x256xf32, #tpu.memory_space<vmem>>, vector<2x4x256xf32>
    tpu.vector_store %arg8[%c0_25, %c0_26, %c0_27], %48 {strides = array<i32>} : memref<2x4x256xf32, #tpu.memory_space<vmem>>, vector<2x4x256xf32>,
    return
  }
  func.func @transform_0(%arg0: i32) -> (i32, i32, i32) {
    %c0_i32 = arith.constant 0 : i32
    %c0_i32_0 = arith.constant 0 : i32
    %c0_i32_1 = arith.constant 0 : i32
    return %c0_i32, %arg0, %c0_i32_0 : i32, i32, i32
  }
  func.func @transform_1(%arg0: i32) -> (i32, i32, i32) {
    %c0_i32 = arith.constant 0 : i32
    %c0_i32_0 = arith.constant 0 : i32
    %c0_i32_1 = arith.constant 0 : i32
    return %c0_i32, %arg0, %c0_i32_0 : i32, i32, i32
  }
  func.func @transform_2(%arg0: i32) -> (i32, i32) {
    %c0_i32 = arith.constant 0 : i32
    %c0_i32_0 = arith.constant 0 : i32
    return %arg0, %c0_i32 : i32, i32
  }
  func.func @transform_3(%arg0: i32) -> (i32, i32) {
    %c0_i32 = arith.constant 0 : i32
    %c0_i32_0 = arith.constant 0 : i32
    return %arg0, %c0_i32 : i32, i32
  }
  func.func @transform_4(%arg0: i32) -> (i32, i32) {
    %c0_i32 = arith.constant 0 : i32
    %c0_i32_0 = arith.constant 0 : i32
    return %arg0, %c0_i32 : i32, i32
  }
  func.func @transform_5(%arg0: i32) -> (i32, i32) {
    %c0_i32 = arith.constant 0 : i32
    %c0_i32_0 = arith.constant 0 : i32
    return %arg0, %c0_i32 : i32, i32
  }
  func.func @transform_6(%arg0: i32) -> (i32, i32, i32) {
    %c0_i32 = arith.constant 0 : i32
    %c0_i32_0 = arith.constant 0 : i32
    %c0_i32_1 = arith.constant 0 : i32
    return %c0_i32, %arg0, %c0_i32_0 : i32, i32, i32
  }
  func.func @transform_7(%arg0: i32) -> (i32, i32, i32) {
    %c0_i32 = arith.constant 0 : i32
    %c0_i32_0 = arith.constant 0 : i32
    %c0_i32_1 = arith.constant 0 : i32
    return %c0_i32, %arg0, %c0_i32_0 : i32, i32, i32
  }
}

</mosaic_0001>

<llo_original>
// kernel: tpu_custom_call.1
$region0: #{tpu_custom_call.1}
  #allocation0 [shape = 'u32[]', space=smem, size = 0x4, offset = 0x4, fixed_abs, tag = 'smem constant byte address 0x4 - core index']
  #allocation1 [shape = 'u32[144,128]{1,0:T(1,128)}', space=vmem, size = 0x12000, scoped, tag = 'internal scratch']
  %s0 = inlined_call_operand.vmem [shape: f32[2,4,256], index: 0, kind: input, shape index: {}]
  %s1 = inlined_call_operand.hbm [shape: f32[2,4,256], index: 1, kind: input, shape index: {}]
  %s2 = inlined_call_operand.vmem [shape: f32[4,1], index: 2, kind: input, shape index: {}]
  %s3 = inlined_call_operand.vmem [shape: f32[4,1], index: 3, kind: input, shape index: {}]
  %s4 = inlined_call_operand.vmem [shape: f32[4,1], index: 4, kind: input, shape index: {}]
  %s5 = inlined_call_operand.vmem [shape: f32[4,1], index: 5, kind: input, shape index: {}]
  %s6 = inlined_call_operand.hbm [shape: f32[2,4,256], index: 6, kind: output, shape index: {0}]
  %s7 = inlined_call_operand.hbm [shape: f32[2,4,256], index: 7, kind: output, shape index: {1}]
  %8 = xla_tuple %s6, %s7
  %s9 = sld [smem:[#allocation0]]
  $region46: #{tpu_custom_call.1} parent=0
    _
  %s11 = ssub.s32 1, %s9
  %s12 = scalar_select 0, %s11, %s9
  $region1: #{tpu_custom_call.1} parent=0
    #allocation2 [shape = 'u8[8192]{0}', space=vmem, size = 0x2000, scoped, tag = 'input window, operand 1, single buffered']
    #allocation3 [shape = 's32[1]{0}', space=sflag, size = 0x4, scoped, tag = 'scoped memory for tpu_custom_call.1']
    #allocation4 [shape = 's32[1]{0}', space=sflag, size = 0x4, scoped, tag = 'scoped memory for tpu_custom_call.1']
    #allocation5 [shape = 'u8[8192]{0}', space=vmem, size = 0x2000, scoped, tag = 'output window, operand 0, single buffered']
    #allocation6 [shape = 'u8[8192]{0}', space=vmem, size = 0x2000, scoped, tag = 'output window, operand 1, single buffered']
    #allocation7 [shape = 's32[1]{0}', space=sflag, size = 0x4, scoped, tag = 'scoped memory for tpu_custom_call.1']
    %13 = vsyncpa [#allocation3], 0
    %14 = vsyncpa [#allocation4], 0
    %15 = vsyncpa [#allocation7], 0
    // Predicated region
    $region2: #{tpu_custom_call.1} parent=1 // pred_check
      _
    $region3: #{tpu_custom_call.1} parent=1 // pred_check_branch
      %17 = sbr.rel (0) target = $region5
    $region4: #{tpu_custom_call.1} parent=1 // pred_region
      _
    $region5: #{tpu_custom_call.1} parent=1 // pred_fallthru
      _
    // Predicated region
    $region6: #{tpu_custom_call.1} parent=1 // pred_check
      _
    $region7: #{tpu_custom_call.1} parent=1 // pred_check_branch
      %19 = sbr.rel (0) target = $region9
    $region8: #{tpu_custom_call.1} parent=1 // pred_region
      %s21 = ssub.s32 256, 256
      %22 = vsyncadd [#allocation3], %s21
      %s23 = sshll.u32 [#allocation2], 4
      %s24 = int_to_ptr.vmem [resolvable:$true] %s23
      %29 = dma.hbm_to_vmem [thread:$0]  %s1, 256, %s24, [#allocation3], 128, 128, 8
    $region9: #{tpu_custom_call.1} parent=1 // pred_fallthru
      _
    // Predicated region
    $region10: #{tpu_custom_call.1} parent=1 // pred_check
      _
    $region11: #{tpu_custom_call.1} parent=1 // pred_check_branch
      %31 = sbr.rel (0) target = $region13
    $region12: #{tpu_custom_call.1} parent=1 // pred_region
      _
    $region13: #{tpu_custom_call.1} parent=1 // pred_fallthru
      _
    // Predicated region
    $region14: #{tpu_custom_call.1} parent=1 // pred_check
      _
    $region15: #{tpu_custom_call.1} parent=1 // pred_check_branch
      %33 = sbr.rel (0) target = $region17
    $region16: #{tpu_custom_call.1} parent=1 // pred_region
      _
    $region17: #{tpu_custom_call.1} parent=1 // pred_fallthru
      _
    // Predicated region
    $region18: #{tpu_custom_call.1} parent=1 // pred_check
      _
    $region19: #{tpu_custom_call.1} parent=1 // pred_check_branch
      %35 = sbr.rel (0) target = $region21
    $region20: #{tpu_custom_call.1} parent=1 // pred_region
      _
    $region21: #{tpu_custom_call.1} parent=1 // pred_fallthru
      _
    // Predicated region
    $region22: #{tpu_custom_call.1} parent=1 // pred_check
      _
    $region23: #{tpu_custom_call.1} parent=1 // pred_check_branch
      %37 = sbr.rel (0) target = $region25
    $region24: #{tpu_custom_call.1} parent=1 // pred_region
      _
    $region25: #{tpu_custom_call.1} parent=1 // pred_fallthru
      _
    // Predicated region
    $region26: #{tpu_custom_call.1} parent=1 // pred_check
      _
    $region27: #{tpu_custom_call.1} parent=1 // pred_check_branch
      %39 = sbr.rel (0) target = $region29
    $region28: #{tpu_custom_call.1} parent=1 // pred_region
      %40 = dma.done [#allocation3], 256
    $region29: #{tpu_custom_call.1} parent=1 // pred_fallthru
      _
    %v41 = vld [vmem:[%s0] sm:$0xff]
    %v42 = vld [vmem:[%s0 + $0x8] sm:$0xff]
    %v43 = vld [vmem:[%s2] sm:$0xf]
    %v44 = vld [vmem:[%s3] sm:$0xf]
    %v47 = vcombine.high %v41, %v41
    %v48 = vcombine.high %v42, %v42
    %vm51 = vcmask 1043456
    %v52 = vsel %vm51, %v41, 0.0
    %v53 = vsel %vm51, %v47, 0.0
    %v54 = vadd.f32 %v52, %v53
    %v55 = vsel %vm51, %v42, 0.0
    %v56 = vadd.f32 %v54, %v55
    %v57 = vsel %vm51, %v48, 0.0
    %v58 = vadd.f32 %v56, %v57
    %59 = vadd.xlane.f32.xlu0 %v58
    %v60 = vpop.xlane.xlu0 %59
    %v61 = vmul.f32 %v60, 0.001953125
    %v64 = vunpack.c.l.s4 839922192
    %v65 = vunpack.c.0.s8 %v64
    %v66 = vlaneseq
    %v67 = vshrl.u32 %v66, 7
    %v68 = vsub.s32 %v65, %v67
    %v69 = vrot.slane %v61, %v68
    %v71 = vsub.f32 %v41, %v69
    %v72 = vsub.f32 %v42, %v69
    %v73 = vmul.f32 %v71, %v71
    %v74 = vmul.f32 %v72, %v72
    %v77 = vcombine.high %v73, %v73
    %v78 = vcombine.high %v74, %v74
    %v81 = vsel %vm51, %v73, 0.0
    %v82 = vsel %vm51, %v77, 0.0
    %v83 = vadd.f32 %v81, %v82
    %v84 = vsel %vm51, %v74, 0.0
    %v85 = vadd.f32 %v83, %v84
    %v86 = vsel %vm51, %v78, 0.0
    %v87 = vadd.f32 %v85, %v86
    %88 = vadd.xlane.f32.xlu0 %v87
    %v89 = vpop.xlane.xlu0 %88
    %v90 = vmul.f32 %v89, 0.001953125
    %v91 = vadd.f32 %v90, 1e-05
    %v92 = vrsqrt.pop %v91
    %v93 = vmul.f32 %v92, %v43
    %95 = vset.pattern.permute.xlu0 0
    %96 = vperm.xlu0 %95, %v93
    %v97 = vpop.permute.xlu0 %96
    %v99 = vunpack.c.l.s4 839922192
    %v100 = vunpack.c.0.s8 %v99
    %v101 = vlaneseq
    %v102 = vshrl.u32 %v101, 7
    %v103 = vsub.s32 %v100, %v102
    %v104 = vrot.slane %v97, %v103
    %v106 = vmul.f32 %v71, %v104
    %v107 = vmul.f32 %v72, %v104
    %109 = vset.pattern.permute.xlu0 0
    %110 = vperm.xlu0 %109, %v44
    %v111 = vpop.permute.xlu0 %110
    %v113 = vunpack.c.l.s4 839922192
    %v114 = vunpack.c.0.s8 %v113
    %v115 = vlaneseq
    %v116 = vshrl.u32 %v115, 7
    %v117 = vsub.s32 %v114, %v116
    %v118 = vrot.slane %v111, %v117
    %v120 = vadd.f32 %v106, %v118
    %v121 = vadd.f32 %v107, %v118
    %122 = vst [vmem:[#allocation5] sm:$0xff] %v120
    %123 = vst [vmem:[#allocation5 + $0x8] sm:$0xff] %v121
    %v124 = vld [vmem:[#allocation2] sm:$0xff]
    %v125 = vld [vmem:[#allocation2 + $0x8] sm:$0xff]
    %v126 = vld [vmem:[%s4] sm:$0xf]
    %v127 = vld [vmem:[%s5] sm:$0xf]
    %v130 = vcombine.high %v124, %v124
    %v131 = vcombine.high %v125, %v125
    %v134 = vsel %vm51, %v124, 0.0
    %v135 = vsel %vm51, %v130, 0.0
    %v136 = vadd.f32 %v134, %v135
    %v137 = vsel %vm51, %v125, 0.0
    %v138 = vadd.f32 %v136, %v137
    %v139 = vsel %vm51, %v131, 0.0
    %v140 = vadd.f32 %v138, %v139
    %141 = vadd.xlane.f32.xlu0 %v140
    %v142 = vpop.xlane.xlu0 %141
    %v143 = vmul.f32 %v142, 0.001953125
    %v146 = vunpack.c.l.s4 839922192
    %v147 = vunpack.c.0.s8 %v146
    %v148 = vlaneseq
    %v149 = vshrl.u32 %v148, 7
    %v150 = vsub.s32 %v147, %v149
    %v151 = vrot.slane %v143, %v150
    %v153 = vsub.f32 %v124, %v151
    %v154 = vsub.f32 %v125, %v151
    %v155 = vmul.f32 %v153, %v153
    %v156 = vmul.f32 %v154, %v154
    %v159 = vcombine.high %v155, %v155
    %v160 = vcombine.high %v156, %v156
    %v163 = vsel %vm51, %v155, 0.0
    %v164 = vsel %vm51, %v159, 0.0
    %v165 = vadd.f32 %v163, %v164
    %v166 = vsel %vm51, %v156, 0.0
    %v167 = vadd.f32 %v165, %v166
    %v168 = vsel %vm51, %v160, 0.0
    %v169 = vadd.f32 %v167, %v168
    %170 = vadd.xlane.f32.xlu0 %v169
    %v171 = vpop.xlane.xlu0 %170
    %v172 = vmul.f32 %v171, 0.001953125
    %v173 = vadd.f32 %v172, 1e-05
    %v174 = vrsqrt.pop %v173
    %v175 = vmul.f32 %v174, %v126
    %177 = vset.pattern.permute.xlu0 0
    %178 = vperm.xlu0 %177, %v175
    %v179 = vpop.permute.xlu0 %178
    %v181 = vunpack.c.l.s4 839922192
    %v182 = vunpack.c.0.s8 %v181
    %v183 = vlaneseq
    %v184 = vshrl.u32 %v183, 7
    %v185 = vsub.s32 %v182, %v184
    %v186 = vrot.slane %v179, %v185
    %v188 = vmul.f32 %v153, %v186
    %v189 = vmul.f32 %v154, %v186
    %191 = vset.pattern.permute.xlu0 0
    %192 = vperm.xlu0 %191, %v127
    %v193 = vpop.permute.xlu0 %192
    %v195 = vunpack.c.l.s4 839922192
    %v196 = vunpack.c.0.s8 %v195
    %v197 = vlaneseq
    %v198 = vshrl.u32 %v197, 7
    %v199 = vsub.s32 %v196, %v198
    %v200 = vrot.slane %v193, %v199
    %v202 = vadd.f32 %v188, %v200
    %v203 = vadd.f32 %v189, %v200
    %204 = vst [vmem:[#allocation6] sm:$0xff] %v202
    %205 = vst [vmem:[#allocation6 + $0x8] sm:$0xff] %v203
    // Predicated region
    $region30: #{tpu_custom_call.1} parent=1 // pred_check
      _
    $region31: #{tpu_custom_call.1} parent=1 // pred_check_branch
      %207 = sbr.rel (0) target = $region33
    $region32: #{tpu_custom_call.1} parent=1 // pred_region
      %s209 = ssub.s32 256, 256
      %210 = vsyncadd [#allocation4], %s209
      %s211 = sshll.u32 [#allocation5], 4
      %s212 = int_to_ptr.vmem [resolvable:$true] %s211
      %217 = dma.vmem_to_hbm [thread:$0]  %s212, 256, %s6, [#allocation4], 128, 128, 8
    $region33: #{tpu_custom_call.1} parent=1 // pred_fallthru
      _
    // Predicated region
    $region34: #{tpu_custom_call.1} parent=1 // pred_check
      _
    $region35: #{tpu_custom_call.1} parent=1 // pred_check_branch
      %219 = sbr.rel (0) target = $region37
    $region36: #{tpu_custom_call.1} parent=1 // pred_region
      %s221 = ssub.s32 256, 256
      %222 = vsyncadd [#allocation7], %s221
      %s223 = sshll.u32 [#allocation6], 4
      %s224 = int_to_ptr.vmem [resolvable:$true] %s223
      %229 = dma.vmem_to_hbm [thread:$0]  %s224, 256, %s7, [#allocation7], 128, 128, 8
    $region37: #{tpu_custom_call.1} parent=1 // pred_fallthru
      _
    // Predicated region
    $region38: #{tpu_custom_call.1} parent=1 // pred_check
      _
    $region39: #{tpu_custom_call.1} parent=1 // pred_check_branch
      %231 = sbr.rel (0) target = $region41
    $region40: #{tpu_custom_call.1} parent=1 // pred_region
      %232 = dma.done [#allocation4], 256
    $region41: #{tpu_custom_call.1} parent=1 // pred_fallthru
      _
    // Predicated region
    $region42: #{tpu_custom_call.1} parent=1 // pred_check
      _
    $region43: #{tpu_custom_call.1} parent=1 // pred_check_branch
      %234 = sbr.rel (0) target = $region45
    $region44: #{tpu_custom_call.1} parent=1 // pred_region
      %235 = dma.done [#allocation7], 256
    $region45: #{tpu_custom_call.1} parent=1 // pred_fallthru
      _
    %236 = vsyncpa [#allocation3], 1
    %237 = vsyncpa [#allocation4], 1
    %238 = vsyncpa [#allocation7], 1

</llo_original>
